<compile_context>
chip_gen: v7x
topology: tpu7x:2x2x1
jax: 0.10.0
libtpu: 0.0.40
codegen_flags: <defaults>
</compile_context>

<pallas_src>
import jax
import jax.numpy as jnp
from jax import lax
from jax.experimental import pallas as pl
from jax.experimental.pallas import tpu as pltpu

_MIB = 1024 * 1024
_TM_FLOOR = 256   # keep the MXU fed; shrink vocab tiles / switch mode before this
_TV_FLOOR = 512   # lane-dense stores; multiples of 128 (>=512 preferred)
_TV_MAX_DEFAULT = 2048
_TM_MAX_DEFAULT = 512


# ---------------------------------------------------------------------------
# Helpers
# ---------------------------------------------------------------------------
def _round_up(a, b):
    return ((a + b - 1) // b) * b


def _halving(hi, lo, quantum):
    """Descending candidate tile sizes hi -> lo, halving, quantized."""
    vals = []
    v = hi
    while v > lo:
        vals.append(v)
        v = max(lo, _round_up(v // 2, quantum))
    vals.append(lo)
    return vals


def _vmem_limit_and_budget():
    """Generation-aware scoped-VMEM limit and tile-selection budget."""
    cap = None
    # Narrow, documented guard: only the hardware query (which may be missing in
    # some environments) is caught; pallas_call/compile errors are NOT swallowed.
    try:
        cap = getattr(pltpu.get_tpu_info(), "vmem_capacity_bytes", None)
    except Exception:
        cap = None
    if not cap:
        cap = 64 * _MIB                       # conservative: v7x per-TC capacity
    cap = int(cap)
    # Headroom for Mosaic internal scratch / semaphores / DMA descriptors.
    limit = max(32 * _MIB, cap - 16 * _MIB)   # ~112 MiB v5e/v6e, ~48 MiB v7x
    budget = limit - 8 * _MIB                 # extra margin for un-modelled temps
    return limit, budget


def _tile_footprint_bytes(tm, tv, hidden, vocab, x_item, w_item, o_item,
                          use_scratch):
    grid_v = -(-vocab // tv)
    fp = 2 * tm * hidden * x_item        # x tile, double-buffered
    fp += 2 * hidden * tv * w_item       # streamed weight tile, double-buffered
    fp += 2 * tm * tv * o_item           # output tile, double-buffered
    fp += 4 * tm * tv * 4                # f32 epilogue temps (logits, exp, mask, ...)
    fp += 2 * tm * 128 * 4               # m / l accumulators (lane-padded)
    if use_scratch:
        fp += grid_v * tm * tv * 4       # resident logits stash for the write pass
    return fp


def _choose_tiles(M, hidden, vocab, x_item, w_item, o_item,
                  tm_max, tv_max, budget, mode):
    sub = {4: 8, 2: 16, 1: 32}.get(x_item, 8)
    lane = 128

    tm_hi = min(_round_up(tm_max, sub), _round_up(M, sub))
    tm_floor = min(tm_hi, _round_up(_TM_FLOOR, sub))
    tv_hi = min(_round_up(tv_max, lane), _round_up(vocab, lane))
    tv_floor = min(tv_hi, _round_up(_TV_FLOOR, lane))

    if mode == "scratch":
        modes = (True,)
    elif mode == "recompute":
        modes = (False,)
    else:
        modes = (True, False)   # prefer the single-matmul (stashed-logits) variant

    for use_scratch in modes:
        for tm in _halving(tm_hi, tm_floor, sub):          # keep tm large ...
            for tv in _halving(tv_hi, tv_floor, lane):     # ... shrink tv first
                if _tile_footprint_bytes(tm, tv, hidden, vocab, x_item, w_item,
                                         o_item, use_scratch) <= budget:
                    return tm, tv, use_scratch
    # Last resort: smallest tiles; recompute mode unless explicitly forced.
    return tm_floor, tv_floor, (mode == "scratch")


# ---------------------------------------------------------------------------
# Kernels
# ---------------------------------------------------------------------------
def _make_kernel(vocab, tv, use_scratch, ragged_v):
    def _mask_padding(logits, j):
        # Columns >= vocab in the (partial) last vocab tile hold garbage from the
        # partial weight block; force them to -inf so they cannot pollute the
        # row max / sum(exp).  Only emitted when the vocab axis is ragged.
        if not ragged_v:
            return logits
        col = j * tv + lax.broadcasted_iota(jnp.int32, logits.shape, 1)
        return jnp.where(col < vocab, logits, -jnp.inf)

    def _online_update(logits, m_sc, l_sc):
        m_prev = m_sc[...]
        m_new = jnp.maximum(m_prev, jnp.max(logits, axis=-1, keepdims=True))
        l_sc[...] = (l_sc[...] * jnp.exp(m_prev - m_new)
                     + jnp.sum(jnp.exp(logits - m_new), axis=-1, keepdims=True))
        m_sc[...] = m_new

    if use_scratch:
        def kernel(x_ref, w_ref, o_ref, logits_sc, m_sc, l_sc):
            p = pl.program_id(1)   # 0: accumulate, 1: write
            j = pl.program_id(2)   # vocab tile

            @pl.when(jnp.logical_and(p == 0, j == 0))
            def _init():
                m_sc[...] = jnp.full(m_sc.shape, -jnp.inf, dtype=m_sc.dtype)
                l_sc[...] = jnp.zeros(l_sc.shape, dtype=l_sc.dtype)

            @pl.when(p == 0)
            def _accumulate():
                logits = _mask_padding(
                    jnp.dot(x_ref[...], w_ref[...],
                            preferred_element_type=jnp.float32), j)
                logits_sc[j] = logits          # stash for the write pass
                _online_update(logits, m_sc, l_sc)

            @pl.when(p == 1)
            def _write():
                lse = m_sc[...] + jnp.log(l_sc[...])
                o_ref[...] = (logits_sc[j] - lse).astype(o_ref.dtype)

        return kernel

    def kernel(x_ref, w_ref, o_ref, m_sc, l_sc):
        p = pl.program_id(1)
        j = pl.program_id(2)

        @pl.when(jnp.logical_and(p == 0, j == 0))
        def _init():
            m_sc[...] = jnp.full(m_sc.shape, -jnp.inf, dtype=m_sc.dtype)
            l_sc[...] = jnp.zeros(l_sc.shape, dtype=l_sc.dtype)

        @pl.when(p == 0)
        def _accumulate():
            logits = _mask_padding(
                jnp.dot(x_ref[...], w_ref[...],
                        preferred_element_type=jnp.float32), j)
            _online_update(logits, m_sc, l_sc)

        @pl.when(p == 1)
        def _write():
            # Recompute this vocab tile's logits (weight tile is re-streamed by
            # the BlockSpec).  Padded garbage columns of a ragged last tile are
            # dropped by the masked partial output store.
            logits = jnp.dot(x_ref[...], w_ref[...],
                             preferred_element_type=jnp.float32)
            lse = m_sc[...] + jnp.log(l_sc[...])
            o_ref[...] = (logits - lse).astype(o_ref.dtype)

    return kernel


# ---------------------------------------------------------------------------
# Wrapper
# ---------------------------------------------------------------------------
def generator_forward(x, weight_t, *, tm_max=_TM_MAX_DEFAULT,
                      tv_max=_TV_MAX_DEFAULT, mode=None):
    """log_softmax(x @ W.T, axis=-1) with W.T pre-transposed to (hidden, vocab).

    x:        (..., hidden)
    weight_t: (hidden, vocab)  -- transpose of the PyTorch nn.Linear weight,
              computed once at init, not per call.
    mode:     None (auto) | "scratch" | "recompute"  (testing / tuning hook)
    """
    assert mode in (None, "scratch", "recompute")
    hidden, vocab = weight_t.shape
    lead_shape = x.shape[:-1]
    x2d = x.reshape(-1, hidden)       # contiguous reshape: no HBM copy
    M = x2d.shape[0]

    x_item = jnp.dtype(x.dtype).itemsize
    w_item = jnp.dtype(weight_t.dtype).itemsize
    o_item = x_item                   # output stays in the input dtype

    vmem_limit, vmem_budget = _vmem_limit_and_budget()
    tm, tv, use_scratch = _choose_tiles(M, hidden, vocab, x_item, w_item, o_item,
                                        tm_max, tv_max, vmem_budget, mode)

    grid_m = pl.cdiv(M, tm)
    grid_v = pl.cdiv(vocab, tv)
    ragged_v = (vocab % tv) != 0

    kernel = _make_kernel(vocab, tv, use_scratch, ragged_v)

    if use_scratch:
        # Weight tiles are only consumed in pass 0; clamp the block index to 0 in
        # pass 1 so the (already resident) block is not re-streamed tile-by-tile
        # during the cheap write pass.
        w_index_map = lambda i, p, j: (0, j * (1 - p))
        scratch_shapes = [
            pltpu.VMEM((grid_v, tm, tv), jnp.float32),   # logits stash
            pltpu.VMEM((tm, 1), jnp.float32),            # running max
            pltpu.VMEM((tm, 1), jnp.float32),            # running sum(exp)
        ]
    else:
        w_index_map = lambda i, p, j: (0, j)             # re-streamed in pass 1
        scratch_shapes = [
            pltpu.VMEM((tm, 1), jnp.float32),
            pltpu.VMEM((tm, 1), jnp.float32),
        ]

    # During pass 0 the output block index is pinned to (i, 0) and never written
    # by the kernel; every (i, j) output block is fully written exactly once in
    # pass 1 before its (single) write-back, so output HBM traffic stays 1x.
    out_index_map = lambda i, p, j: (i, j * p)

    cost = pl.CostEstimate(
        flops=2 * M * hidden * vocab * (1 if use_scratch else 2),
        transcendentals=M * vocab,
        bytes_accessed=(M * hidden * x_item
                        + hidden * vocab * w_item * (1 if use_scratch else 2)
                        + M * vocab * o_item),
    )

    out = pl.pallas_call(
        kernel,
        out_shape=jax.ShapeDtypeStruct((M, vocab), x.dtype),
        grid_spec=pltpu.PrefetchScalarGridSpec(
            num_scalar_prefetch=0,
            grid=(grid_m, 2, grid_v),
            in_specs=[
                pl.BlockSpec((tm, hidden), lambda i, p, j: (i, 0)),
                pl.BlockSpec((hidden, tv), w_index_map),
            ],
            out_specs=pl.BlockSpec((tm, tv), out_index_map),
            scratch_shapes=scratch_shapes,
        ),
        compiler_params=pltpu.CompilerParams(
            # M tiles are independent -> megacore-shardable on v7x; the streamed
            # weight makes per-core duplication a non-issue.
            dimension_semantics=("parallel", "arbitrary", "arbitrary"),
            vmem_limit_bytes=vmem_limit,
        ),
        cost_estimate=cost,
    )(x2d, weight_t)

    return out.reshape(*lead_shape, vocab)


class Generator:
    """Pallas/TPU port of the PyTorch Generator: log_softmax(Linear(x), dim=-1)."""

    def __init__(self, weight, *, tm_max=_TM_MAX_DEFAULT, tv_max=_TV_MAX_DEFAULT):
        # weight: (vocab, hidden), PyTorch nn.Linear layout (no bias).
        # Transposed ONCE here so the kernel contracts in native (M,K)x(K,N) form.
        self.weight_t = jnp.asarray(weight).T          # (hidden, vocab)
        self.tm_max = tm_max
        self.tv_max = tv_max

    def __call__(self, x):
        return generator_forward(x, self.weight_t,
                                 tm_max=self.tm_max, tv_max=self.tv_max)


# ---------------------------------------------------------------------------
# Self-test
# ---------------------------------------------------------------------------
if __name__ == "__main__":
    batch, seq, hidden, vocab = 2, 8, 32, 128

    key = jax.random.PRNGKey(0)
    kx, kw1, kw2 = jax.random.split(key, 3)
    x = jax.random.normal(kx, (batch, seq, hidden), dtype=jnp.float32)
    bound = 1.0 / jnp.sqrt(jnp.float32(hidden))
    weight = jax.random.uniform(kw1, (vocab, hidden), dtype=jnp.float32,
                                minval=-bound, maxval=bound)

    # Default auto-tiled path.
    gen = Generator(weight)
    out = jax.block_until_ready(gen(x))
    ref = jax.nn.log_softmax(x @ weight.T, axis=-1)
    assert out.shape == (batch, seq, vocab)
    assert bool(jnp.allclose(out, ref, atol=1e-4, rtol=1e-5))

    # Forced multi-tile config with a ragged vocab (320 = 2 full 128-lane tiles
    # + a 64-lane tail) to exercise weight streaming, the online softmax, the
    # padded-column mask, and both kernel variants.
    vocab2 = 320
    weight2 = jax.random.uniform(kw2, (vocab2, hidden), dtype=jnp.float32,
                                 minval=-bound, maxval=bound)
    ref2 = jax.nn.log_softmax(x @ weight2.T, axis=-1)
    w2_t = jnp.asarray(weight2).T
    for forced_mode in ("scratch", "recompute"):
        out2 = jax.block_until_ready(
            generator_forward(x, w2_t, tm_max=8, tv_max=128, mode=forced_mode))
        assert out2.shape == (batch, seq, vocab2)
        assert bool(jnp.allclose(out2, ref2, atol=1e-4, rtol=1e-5))

    print("KERNEL_OK")
</pallas_src>

<mosaic_0001>
module attributes {stable_mosaic.version = 11 : i64} {
  func.func @kernel(%arg0: i32, %arg1: i32, %arg2: i32, %arg3: memref<16x32xf32, #tpu.memory_space<vmem>>, %arg4: memref<32x128xf32, #tpu.memory_space<vmem>>, %arg5: memref<16x128xf32, #tpu.memory_space<vmem>>, %arg6: memref<1x16x128xf32, #tpu.memory_space<vmem>>, %arg7: memref<16x1xf32, #tpu.memory_space<vmem>>, %arg8: memref<16x1xf32, #tpu.memory_space<vmem>>) attributes {dimension_semantics = [#tpu.dimension_semantics<parallel>, #tpu.dimension_semantics<arbitrary>, #tpu.dimension_semantics<arbitrary>], iteration_bounds = array<i64: 1, 2, 1>, scalar_prefetch = 0 : i64, scratch_operands = 3 : i64, tpu.core_type = #tpu.core_type<tc>, window_params = [{transform_indices = @transform_0, window_bounds = array<i64: 16, 32>}, {transform_indices = @transform_1, window_bounds = array<i64: 32, 128>}, {transform_indices = @transform_2, window_bounds = array<i64: 16, 128>}]} {
    %c0_i32 = arith.constant 0 : i32
    %0 = arith.cmpi eq, %arg1, %c0_i32 : i32
    %c0_i32_0 = arith.constant 0 : i32
    %1 = arith.cmpi eq, %arg2, %c0_i32_0 : i32
    %2 = arith.andi %0, %1 : i1
    %3 = arith.extui %2 : i1 to i32
    %c0_i32_1 = arith.constant 0 : i32
    %4 = arith.cmpi ne, %3, %c0_i32_1 : i32
    scf.if %4 {
      %cst = arith.constant 0xFF800000 : f32
      %11 = vector.broadcast %cst : f32 to vector<16x1xf32>
      %c0 = arith.constant 0 : index
      %c0_5 = arith.constant 0 : index
      %12 = vector.load %arg7[%c0, %c0_5] : memref<16x1xf32, #tpu.memory_space<vmem>>, vector<16x1xf32>
      tpu.vector_store %arg7[%c0, %c0_5], %11 {strides = array<i32>} : memref<16x1xf32, #tpu.memory_space<vmem>>, vector<16x1xf32>,
      %cst_6 = arith.constant 0.000000e+00 : f32
      %13 = vector.broadcast %cst_6 : f32 to vector<16x1xf32>
      %c0_7 = arith.constant 0 : index
      %c0_8 = arith.constant 0 : index
      %14 = vector.load %arg8[%c0_7, %c0_8] : memref<16x1xf32, #tpu.memory_space<vmem>>, vector<16x1xf32>
      tpu.vector_store %arg8[%c0_7, %c0_8], %13 {strides = array<i32>} : memref<16x1xf32, #tpu.memory_space<vmem>>, vector<16x1xf32>,
    } else {
    }
    %c0_i32_2 = arith.constant 0 : i32
    %5 = arith.cmpi eq, %arg1, %c0_i32_2 : i32
    %6 = arith.extui %5 : i1 to i32
    %c0_i32_3 = arith.constant 0 : i32
    %7 = arith.cmpi ne, %6, %c0_i32_3 : i32
    scf.if %7 {
      %c0 = arith.constant 0 : index
      %c0_5 = arith.constant 0 : index
      %11 = vector.load %arg3[%c0, %c0_5] : memref<16x32xf32, #tpu.memory_space<vmem>>, vector<16x32xf32>
      %c0_6 = arith.constant 0 : index
      %c0_7 = arith.constant 0 : index
      %12 = vector.load %arg4[%c0_6, %c0_7] : memref<32x128xf32, #tpu.memory_space<vmem>>, vector<32x128xf32>
      %cst = arith.constant dense<0.000000e+00> : vector<16x128xf32>
      %13 = tpu.matmul %11, %12, %cst {dimension_numbers = #tpu.dot_dimension_numbers<[1], [0], [0], [1], [0, 0, 1, 1], [], []>} : vector<16x32xf32>, vector<32x128xf32>, vector<16x128xf32> -> vector<16x128xf32>
      %14 = arith.index_cast %arg2 : i32 to index
      %c0_8 = arith.constant 0 : index
      %c0_9 = arith.constant 0 : index
      %15 = vector.load %arg6[%14, %c0_8, %c0_9] : memref<1x16x128xf32, #tpu.memory_space<vmem>>, vector<1x16x128xf32>
      %16 = vector.shape_cast %15 : vector<1x16x128xf32> to vector<16x128xf32>
      %17 = vector.shape_cast %13 : vector<16x128xf32> to vector<1x16x128xf32>
      tpu.vector_store %arg6[%14, %c0_8, %c0_9], %17 {strides = array<i32>} : memref<1x16x128xf32, #tpu.memory_space<vmem>>, vector<1x16x128xf32>,
      %c0_10 = arith.constant 0 : index
      %c0_11 = arith.constant 0 : index
      %18 = vector.load %arg7[%c0_10, %c0_11] : memref<16x1xf32, #tpu.memory_space<vmem>>, vector<16x1xf32>
      %cst_12 = arith.constant dense<0xFF800000> : vector<16xf32>
      %19 = vector.multi_reduction <maximumf>, %13, %cst_12 [1] : vector<16x128xf32> to vector<16xf32>
      %20 = vector.shape_cast %19 : vector<16xf32> to vector<16x1xf32>
      %21 = arith.maximumf %18, %20 : vector<16x1xf32>
      %c0_13 = arith.constant 0 : index
      %c0_14 = arith.constant 0 : index
      %22 = vector.load %arg8[%c0_13, %c0_14] : memref<16x1xf32, #tpu.memory_space<vmem>>, vector<16x1xf32>
      %23 = arith.subf %18, %21 : vector<16x1xf32>
      %24 = math.exp %23 : vector<16x1xf32>
      %25 = arith.mulf %22, %24 : vector<16x1xf32>
      %26 = vector.broadcast %21 : vector<16x1xf32> to vector<16x128xf32>
      %27 = arith.subf %13, %26 : vector<16x128xf32>
      %28 = math.exp %27 : vector<16x128xf32>
      %cst_15 = arith.constant dense<0.000000e+00> : vector<16xf32>
      %29 = vector.multi_reduction <add>, %28, %cst_15 [1] : vector<16x128xf32> to vector<16xf32>
      %30 = vector.shape_cast %29 : vector<16xf32> to vector<16x1xf32>
      %31 = arith.addf %25, %30 : vector<16x1xf32>
      %c0_16 = arith.constant 0 : index
      %c0_17 = arith.constant 0 : index
      %32 = vector.load %arg8[%c0_16, %c0_17] : memref<16x1xf32, #tpu.memory_space<vmem>>, vector<16x1xf32>
      tpu.vector_store %arg8[%c0_16, %c0_17], %31 {strides = array<i32>} : memref<16x1xf32, #tpu.memory_space<vmem>>, vector<16x1xf32>,
      %c0_18 = arith.constant 0 : index
      %c0_19 = arith.constant 0 : index
      %33 = vector.load %arg7[%c0_18, %c0_19] : memref<16x1xf32, #tpu.memory_space<vmem>>, vector<16x1xf32>
      tpu.vector_store %arg7[%c0_18, %c0_19], %21 {strides = array<i32>} : memref<16x1xf32, #tpu.memory_space<vmem>>, vector<16x1xf32>,
    } else {
    }
    %c1_i32 = arith.constant 1 : i32
    %8 = arith.cmpi eq, %arg1, %c1_i32 : i32
    %9 = arith.extui %8 : i1 to i32
    %c0_i32_4 = arith.constant 0 : i32
    %10 = arith.cmpi ne, %9, %c0_i32_4 : i32
    scf.if %10 {
      %c0 = arith.constant 0 : index
      %c0_5 = arith.constant 0 : index
      %11 = vector.load %arg7[%c0, %c0_5] : memref<16x1xf32, #tpu.memory_space<vmem>>, vector<16x1xf32>
      %c0_6 = arith.constant 0 : index
      %c0_7 = arith.constant 0 : index
      %12 = vector.load %arg8[%c0_6, %c0_7] : memref<16x1xf32, #tpu.memory_space<vmem>>, vector<16x1xf32>
      %13 = math.log %12 : vector<16x1xf32>
      %14 = arith.addf %11, %13 : vector<16x1xf32>
      %15 = arith.index_cast %arg2 : i32 to index
      %c0_8 = arith.constant 0 : index
      %c0_9 = arith.constant 0 : index
      %16 = vector.load %arg6[%15, %c0_8, %c0_9] : memref<1x16x128xf32, #tpu.memory_space<vmem>>, vector<1x16x128xf32>
      %17 = vector.shape_cast %16 : vector<1x16x128xf32> to vector<16x128xf32>
      %18 = vector.broadcast %14 : vector<16x1xf32> to vector<16x128xf32>
      %19 = arith.subf %17, %18 : vector<16x128xf32>
      %c0_10 = arith.constant 0 : index
      %c0_11 = arith.constant 0 : index
      %20 = vector.load %arg5[%c0_10, %c0_11] : memref<16x128xf32, #tpu.memory_space<vmem>>, vector<16x128xf32>
      tpu.vector_store %arg5[%c0_10, %c0_11], %19 {strides = array<i32>} : memref<16x128xf32, #tpu.memory_space<vmem>>, vector<16x128xf32>,
    } else {
    }
    return
  }
  func.func @transform_0(%arg0: i32, %arg1: i32, %arg2: i32) -> (i32, i32) {
    %c0_i32 = arith.constant 0 : i32
    %c0_i32_0 = arith.constant 0 : i32
    return %arg0, %c0_i32 : i32, i32
  }
  func.func @transform_1(%arg0: i32, %arg1: i32, %arg2: i32) -> (i32, i32) {
    %c1_i32 = arith.constant 1 : i32
    %0 = arith.subi %c1_i32, %arg1 : i32
    %1 = arith.muli %arg2, %0 : i32
    %c0_i32 = arith.constant 0 : i32
    %c0_i32_0 = arith.constant 0 : i32
    return %c0_i32, %1 : i32, i32
  }
  func.func @transform_2(%arg0: i32, %arg1: i32, %arg2: i32) -> (i32, i32) {
    %0 = arith.muli %arg2, %arg1 : i32
    %c0_i32 = arith.constant 0 : i32
    return %arg0, %0 : i32, i32
  }
}

</mosaic_0001>

<llo_original>
// kernel: tpu_custom_call.1
$region0: #{tpu_custom_call.1}
  #allocation0 [shape = 'u32[]', space=smem, size = 0x4, offset = 0x4, fixed_abs, tag = 'smem constant byte address 0x4 - core index']
  #allocation1 [shape = 'u32[144,128]{1,0:T(1,128)}', space=vmem, size = 0x12000, scoped, tag = 'internal scratch']
  #allocation2 [shape = 'f32[1,16,128]{2,1,0:T(8,128)}', space=vmem, size = 0x2000, scoped, tag = 'scratch operand']
  #allocation3 [shape = 'f32[16,1]{1,0:T(8,128)}', space=vmem, size = 0x2000, scoped, tag = 'scratch operand']
  #allocation4 [shape = 'f32[16,1]{1,0:T(8,128)}', space=vmem, size = 0x2000, scoped, tag = 'scratch operand']
  %s0 = inlined_call_operand.hbm [shape: f32[16,32], index: 0, kind: input, shape index: {}]
  %s1 = inlined_call_operand.hbm [shape: f32[32,128], index: 1, kind: input, shape index: {}]
  %s2 = inlined_call_operand.hbm [shape: f32[16,128], index: 2, kind: output, shape index: {}]
  %s3 = sld [smem:[#allocation0]]
  $region61: #{tpu_custom_call.1} parent=0
    _
  %s5 = ssub.s32 1, %s3
  %s6 = scalar_select 0, %s5, %s3
  $region1: #{tpu_custom_call.1} parent=0
    #allocation5 [shape = 'u8[8192]{0}', space=vmem, size = 0x2000, scoped, tag = 'input window, operand 0, single buffered']
    #allocation6 [shape = 's32[2]{0}', space=sflag, size = 0x8, scoped, tag = 'scoped memory for tpu_custom_call.1']
    #allocation7 [shape = 's32[2]{0}', space=sflag, size = 0x8, scoped, tag = 'scoped memory for tpu_custom_call.1']
    #allocation8 [shape = 'u8[32768]{0}', space=vmem, size = 0x8000, scoped, tag = 'input window, operand 1']
    #allocation9 [shape = 's32[2]{0}', space=sflag, size = 0x8, scoped, tag = 'scoped memory for tpu_custom_call.1']
    #allocation10 [shape = 'u8[16384]{0}', space=vmem, size = 0x4000, scoped, tag = 'output window, operand 0']
    %7 = vsyncpa [#allocation6], 0
    %8 = vsyncpa [#allocation9], 0
    %s9 = scalar_lea.sflag [#allocation9], 1
    %10 = vsyncpa %s9, 0
    %11 = vsyncpa [#allocation7], 0
    %s12 = scalar_lea.sflag [#allocation7], 1
    %13 = vsyncpa %s12, 0
    loop: start=0, step=1, limit=4
    $region2: #{tpu_custom_call.1} parent=1 // loop_pre_header
      _
    $region3: #{tpu_custom_call.1} parent=1 // loop_header
      %s15 = sphi 0, %s19
      %p16 = scmp.ge.s32.totalorder %s15, 4
      %s22 = sphi 0, %s41
      %s23 = sphi 0, %s37
      %s24 = sphi 0, %s33
      %s25 = sphi 0, %s22
      %s26 = sphi 0, %s23
      %s27 = sphi 0, %s24
      %s28 = sphi 0, %s25
      %s29 = sphi 0, %s26
      %s30 = sphi 0, %s27
      %s44 = sphi 0, %s46
      %s47 = sphi 0, %s44
      %s48 = sphi 0, %s47
      %s64 = sphi 0, %s48
      %s74 = sphi 0, %s76
      %s77 = sphi 0, %s74
      %s78 = sphi 0, %s77
      %s94 = sphi 0, %s78
      %s104 = sphi 0, %s106
      %s107 = sphi 0, %s104
      %s108 = sphi 0, %s107
      %s124 = sphi 0, %s108
    $region4: #{tpu_custom_call.1} parent=1 // loop_header_branch
      %18 = sbr.rel (%p16) target = $region8
    $region5: #{tpu_custom_call.1} parent=1 // loop_body
      %s20 = ssub.s32 %s15, 1
      %s21 = ssub.s32 %s15, 2
      %s31 = sadd.s32 1, %s24
      %p32 = scmp.ge.s32.totalorder %s31, 1
      %s33 = scalar_select %p32, 0, %s31
      %s34 = sadd.s32 1, %s23
      %s35 = scalar_select %p32, %s34, %s23
      %p36 = scmp.ge.s32.totalorder %s35, 2
      %s37 = scalar_select %p36, 0, %s35
      %s38 = sadd.s32 1, %s22
      %s39 = scalar_select %p36, %s38, %s22
      %p40 = scmp.ge.s32.totalorder %s39, 1
      %s41 = scalar_select %p40, 0, %s39
      %s42 = ssub.s32 %s22, %s41
      %p43 = scmp.eq.s32.totalorder %s42, 0
      %s45 = sadd.s32 %s44, 1
      %s46 = scalar_select %p43, %s44, %s45
      %p49 = pneg %p43
      %p50 = scmp.eq.s32.totalorder %s15, 1
      %p51 = por %p49, %p50
      %p52 = scmp.ne.s32.totalorder %s44, %s47
      %p53 = scmp.eq.s32.totalorder %s15, 0
      %p54 = por %p52, %p53
      %p55 = scmp.ne.s32.totalorder %s44, %s47
      %p56 = scmp.eq.s32.totalorder %s20, 1
      %p57 = por %p55, %p56
      %p58 = scmp.ne.s32.totalorder %s47, %s48
      %p59 = scmp.eq.s32.totalorder %s20, 0
      %p60 = por %p58, %p59
      %p61 = scmp.ne.s32.totalorder %s47, %s48
      %p62 = scmp.eq.s32.totalorder %s21, 1
      %p63 = por %p61, %p62
      %p65 = scmp.ne.s32.totalorder %s48, %s64
      %p66 = scmp.eq.s32.totalorder %s21, 0
      %p67 = por %p65, %p66
      %s68 = ssub.s32 1, %s23
      %s69 = smul.u32 %s24, %s68
      %s70 = ssub.s32 1, %s37
      %s71 = smul.u32 %s33, %s70
      %s72 = ssub.s32 %s69, %s71
      %p73 = scmp.eq.s32.totalorder %s72, 0
      %s75 = sadd.s32 %s74, 1
      %s76 = scalar_select %p73, %s74, %s75
      %p79 = pneg %p73
      %p80 = scmp.eq.s32.totalorder %s15, 1
      %p81 = por %p79, %p80
      %p82 = scmp.ne.s32.totalorder %s74, %s77
      %p83 = scmp.eq.s32.totalorder %s15, 0
      %p84 = por %p82, %p83
      %p85 = scmp.ne.s32.totalorder %s74, %s77
      %p86 = scmp.eq.s32.totalorder %s20, 1
      %p87 = por %p85, %p86
      %p88 = scmp.ne.s32.totalorder %s77, %s78
      %p89 = scmp.eq.s32.totalorder %s20, 0
      %p90 = por %p88, %p89
      %p91 = scmp.ne.s32.totalorder %s77, %s78
      %p92 = scmp.eq.s32.totalorder %s21, 1
      %p93 = por %p91, %p92
      %p95 = scmp.ne.s32.totalorder %s78, %s94
      %p96 = scmp.eq.s32.totalorder %s21, 0
      %p97 = por %p95, %p96
      %s98 = smul.u32 %s24, %s23
      %s99 = smul.u32 %s33, %s37
      %s100 = ssub.s32 %s22, %s41
      %s101 = ssub.s32 %s98, %s99
      %s102 = sor.u32 %s100, %s101
      %p103 = scmp.eq.s32.totalorder %s102, 0
      %s105 = sadd.s32 %s104, 1
      %s106 = scalar_select %p103, %s104, %s105
      %p109 = pneg %p103
      %p110 = scmp.eq.s32.totalorder %s15, 1
      %p111 = por %p109, %p110
      %p112 = scmp.ne.s32.totalorder %s104, %s107
      %p113 = scmp.eq.s32.totalorder %s15, 0
      %p114 = por %p112, %p113
      %p115 = scmp.ne.s32.totalorder %s104, %s107
      %p116 = scmp.eq.s32.totalorder %s20, 1
      %p117 = por %p115, %p116
      %p118 = scmp.ne.s32.totalorder %s107, %s108
      %p119 = scmp.eq.s32.totalorder %s20, 0
      %p120 = por %p118, %p119
      %p121 = scmp.ne.s32.totalorder %s107, %s108
      %p122 = scmp.eq.s32.totalorder %s21, 1
      %p123 = por %p121, %p122
      %p125 = scmp.ne.s32.totalorder %s108, %s124
      %p126 = scmp.eq.s32.totalorder %s21, 0
      %p127 = por %p125, %p126
      %p128 = scmp.le.s32.totalorder 1, %s15
      %p129 = scmp.lt.s32.totalorder %s15, 3
      %p130 = pnand %p128, %p129
      %p131 = pneg %p130
      // Predicated region
      $region9: #{tpu_custom_call.1} parent=5 // pred_check
        _
      $region10: #{tpu_custom_call.1} parent=5 // pred_check_branch
        %133 = sbr.rel (%p130) target = $region12
      $region11: #{tpu_custom_call.1} parent=5 // pred_region
        %s134 = ssub.s32 %s15, 1
        // Predicated region
        $region13: #{tpu_custom_call.1} parent=11 // pred_check
          %p135 = pneg %p60
        $region14: #{tpu_custom_call.1} parent=11 // pred_check_branch
          %137 = sbr.rel (%p135) target = $region16
        $region15: #{tpu_custom_call.1} parent=11 // pred_region
          %s138 = smul.u32 2, %s25
          %s140 = ssub.s32 256, 256
          %141 = vsyncadd [#allocation6], %s140
          %s142 = smul.addr %s138, 128
          %s143 = scalar_lea.hbm %s0, %s142
          %s144 = sshll.u32 [#allocation5], 4
          %s145 = int_to_ptr.vmem [resolvable:$true] %s144
          %150 = dma.hbm_to_vmem [thread:$0]  %s143, 256, %s145, [#allocation6], 128, 128, 8
        $region16: #{tpu_custom_call.1} parent=11 // pred_fallthru
          _
      $region12: #{tpu_custom_call.1} parent=5 // pred_fallthru
        _
      %p151 = scmp.lt.s32.totalorder %s15, 2
      // Predicated region
      $region17: #{tpu_custom_call.1} parent=5 // pred_check
        %p152 = pneg %p151
      $region18: #{tpu_custom_call.1} parent=5 // pred_check_branch
        %154 = sbr.rel (%p152) target = $region20
      $region19: #{tpu_custom_call.1} parent=5 // pred_region
        // Predicated region
        $region21: #{tpu_custom_call.1} parent=19 // pred_check
          %p155 = pneg %p84
        $region22: #{tpu_custom_call.1} parent=19 // pred_check_branch
          %157 = sbr.rel (%p155) target = $region24
        $region23: #{tpu_custom_call.1} parent=19 // pred_region
          %s158 = sand.u32 %s74, 1
          %s159 = scalar_lea.sflag [#allocation9], %s158
          %s160 = sand.u32 %s74, 1
          %s161 = smul.addr %s160, 32
          %s162 = scalar_lea.vmem [#allocation8], %s161
          %s163 = ssub.s32 1, %s23
          %s164 = smul.u32 %s24, %s163
          %s166 = ssub.s32 512, 512
          %167 = vsyncadd %s159, %s166
          %s168 = smul.addr %s164, 128
          %s169 = scalar_lea.hbm %s1, %s168
          %s170 = sshll.u32 %s162, 4
          %s171 = int_to_ptr.vmem [resolvable:$true] %s170
          %176 = dma.hbm_to_vmem [thread:$0]  %s169, 512, %s171, %s159, 128, 128, 8
        $region24: #{tpu_custom_call.1} parent=19 // pred_fallthru
          _
      $region20: #{tpu_custom_call.1} parent=5 // pred_fallthru
        _
      %p177 = scmp.le.s32.totalorder 1, %s15
      %p178 = scmp.lt.s32.totalorder %s15, 3
      %p179 = pnand %p177, %p178
      %p180 = pneg %p179
      // Predicated region
      $region25: #{tpu_custom_call.1} parent=5 // pred_check
        _
      $region26: #{tpu_custom_call.1} parent=5 // pred_check_branch
        %182 = sbr.rel (%p179) target = $region28
      $region27: #{tpu_custom_call.1} parent=5 // pred_region
        %s183 = ssub.s32 %s15, 1
        // Predicated region
        $region29: #{tpu_custom_call.1} parent=27 // pred_check
          %p184 = pneg %p60
        $region30: #{tpu_custom_call.1} parent=27 // pred_check_branch
          %186 = sbr.rel (%p184) target = $region32
        $region31: #{tpu_custom_call.1} parent=27 // pred_region
          %187 = dma.done [#allocation6], 256
        $region32: #{tpu_custom_call.1} parent=27 // pred_fallthru
          _
        %s188 = sand.u32 %s77, 1
        %s189 = scalar_lea.sflag [#allocation9], %s188
        %s190 = sand.u32 %s77, 1
        %s191 = smul.addr %s190, 32
        %s192 = scalar_lea.vmem [#allocation8], %s191
        // Predicated region
        $region33: #{tpu_custom_call.1} parent=27 // pred_check
          %p193 = pneg %p90
        $region34: #{tpu_custom_call.1} parent=27 // pred_check_branch
          %195 = sbr.rel (%p193) target = $region36
        $region35: #{tpu_custom_call.1} parent=27 // pred_region
          %196 = dma.done %s189, 512
        $region36: #{tpu_custom_call.1} parent=27 // pred_fallthru
          _
        %p197 = pneg %p60
        %p198 = pneg %p57
        %s199 = sand.u32 %s77, 1
        %s200 = scalar_lea.sflag [#allocation9], %s199
        %s201 = sand.u32 %s77, 1
        %s202 = smul.addr %s201, 32
        %s203 = scalar_lea.vmem [#allocation8], %s202
        %p204 = pneg %p90
        %p205 = pneg %p87
        %p206 = pneg %p120
        %p207 = pneg %p117
        %s208 = sand.u32 %s107, 1
        %s209 = scalar_lea.sflag [#allocation7], %s208
        %s210 = sand.u32 %s107, 1
        %s211 = smul.addr %s210, 16
        %s212 = scalar_lea.vmem [#allocation10], %s211
        %s213 = smul.u32 2, %s25
        %s214 = ssub.s32 1, %s26
        %s215 = smul.u32 %s27, %s214
        %s216 = smul.u32 %s27, %s26
        %s217 = smul.u32 2, %s25
        %p218 = scmp.eq.s32.totalorder %s26, 0
        %p219 = scmp.eq.s32.totalorder %s27, 0
        %p220 = pnand %p218, %p219
        %p221 = pneg %p220
        // Predicated region
        $region37: #{tpu_custom_call.1} parent=27 // pred_check
          _
        $region38: #{tpu_custom_call.1} parent=27 // pred_check_branch
          %223 = sbr.rel (%p220) target = $region40
        $region39: #{tpu_custom_call.1} parent=27 // pred_region
          %vm224 = vcmask 7168
          %225 = vst.msk [vmem:[#allocation3] sm:$0xff] %vm224, -inf
          %226 = vst.msk [vmem:[#allocation3 + $0x8] sm:$0xff] %vm224, -inf
          %227 = vst.msk [vmem:[#allocation4] sm:$0xff] %vm224, 0.0
          %228 = vst.msk [vmem:[#allocation4 + $0x8] sm:$0xff] %vm224, 0.0
        $region40: #{tpu_custom_call.1} parent=27 // pred_fallthru
          _
        // Predicated region
        $region41: #{tpu_custom_call.1} parent=27 // pred_check
          %p229 = pneg %p218
        $region42: #{tpu_custom_call.1} parent=27 // pred_check_branch
          %231 = sbr.rel (%p229) target = $region44
        $region43: #{tpu_custom_call.1} parent=27 // pred_region
          %v232 = vld [vmem:[#allocation5] sm:$0xff]
          %v233 = vld [vmem:[#allocation5 + $0x8] sm:$0xff]
          %v234 = vld [vmem:[%s192] sm:$0xff]
          %v235 = vld [vmem:[%s192 + $0x8] sm:$0xff]
          %v236 = vld [vmem:[%s192 + $0x10] sm:$0xff]
          %v237 = vld [vmem:[%s192 + $0x18] sm:$0xff]
          %vm238 = vcmask 261120
          %v240 = vsel %vm238, %v232, 0
          %v243 = vsel %vm238, %v233, 0
          %245 = vmatprep.subr.mxu0 0.0
          %246 = vmatpush1.msra.mxu0 %v234
          %247 = vmatprep.subr.mxu0 0.0
          %248 = vmatpush1.msra.mxu0 %v235
          %249 = vmatprep.subr.mxu0 0.0
          %250 = vmatpush1.msra.mxu0 %v236
          %251 = vmatprep.subr.mxu0 0.0
          %252 = vmatpush1.msra.mxu0 %v237
          %253 = vmatprep.subr.mxu0 0.0
          %254 = vmatpush1.msra.mxu0 0.0
          %255 = vmatprep.subr.mxu0 0.0
          %256 = vmatpush1.msra.mxu0 0.0
          %257 = vmatprep.subr.mxu0 0.0
          %258 = vmatpush1.msra.mxu0 0.0
          %259 = vmatprep.subr.mxu0 0.0
          %260 = vmatpush1.msra.mxu0 0.0
          %261 = vmatprep.subr.mxu0 0.0
          %262 = vmatpush1.msra.mxu0 0.0
          %263 = vmatprep.subr.mxu0 0.0
          %264 = vmatpush1.msra.mxu0 0.0
          %265 = vmatprep.subr.mxu0 0.0
          %266 = vmatpush1.msra.mxu0 0.0
          %267 = vmatprep.subr.mxu0 0.0
          %268 = vmatpush1.msra.mxu0 0.0
          %269 = vmatprep.subr.mxu0 0.0
          %270 = vmatpush1.msra.mxu0 0.0
          %271 = vmatprep.subr.mxu0 0.0
          %272 = vmatpush1.msra.mxu0 0.0
          %273 = vmatprep.subr.mxu0 0.0
          %274 = vmatpush1.msra.mxu0 0.0
          %275 = vmatprep.subr.mxu0 0.0
          %276 = vmatpush1.msra.mxu0 0.0
          %277 = vmatprep.subr.mxu0 0.0
          %278 = vmatpush1.msra.mxu0 0.0
          %279 = vmatprep.subr.mxu0 0.0
          %280 = vmatpush1.msra.mxu0 0.0
          %281 = vmatprep.subr.mxu0 0.0
          %282 = vmatpush1.msra.mxu0 0.0
          %283 = vmatprep.subr.mxu0 0.0
          %284 = vmatpush1.msra.mxu0 0.0
          %285 = vmatprep.subr.mxu0 0.0
          %286 = vmatpush1.msra.mxu0 0.0
          %287 = vmatprep.subr.mxu0 0.0
          %288 = vmatpush1.msra.mxu0 0.0
          %289 = vmatprep.subr.mxu0 0.0
          %290 = vmatpush1.msra.mxu0 0.0
          %291 = vmatprep.subr.mxu0 0.0
          %292 = vmatpush1.msra.mxu0 0.0
          %293 = vmatprep.subr.mxu0 0.0
          %294 = vmatpush1.msra.mxu0 0.0
          %295 = vmatprep.subr.mxu0 0.0
          %296 = vmatpush1.msra.mxu0 0.0
          %297 = vmatprep.subr.mxu0 0.0
          %298 = vmatpush1.msra.mxu0 0.0
          %299 = vmatprep.subr.mxu0 0.0
          %300 = vmatpush1.msra.mxu0 0.0
          %301 = vmatprep.subr.mxu0 0.0
          %302 = vmatpush1.msra.mxu0 0.0
          %303 = vmatprep.subr.mxu0 0.0
          %304 = vmatpush1.msra.mxu0 0.0
          %305 = vmatprep.subr.mxu0 0.0
          %306 = vmatpush1.msra.mxu0 0.0
          %307 = vmatprep.subr.mxu0 0.0
          %308 = vmatpush1.msra.mxu0 0.0
          %309 = vmatprep.mubr.f32.mxu0 0.0
          %310 = vmatmul.mubr.f32.gmra.mrb[0].mxu0 %v240
          %v311 = vpop.f32.mrb[0].mxu0
          %v312 = vadd.f32 0.0, %v311
          %v313 = vpop.f32.mrb[0].mxu0
          %314 = vmatprep.mubr.f32.mxu0 0.0
          %315 = vmatmul.mubr.f32.gmra.mrb[0].mxu0 %v243
          %v316 = vpop.f32.mrb[0].mxu0
          %v317 = vadd.f32 0.0, %v316
          %v318 = vpop.f32.mrb[0].mxu0
          %319 = vdwg.mxu0
          %s320 = smul.u32 %s27, 16
          %s321 = scalar_lea.vmem [#allocation2], %s320
          %322 = vst [vmem:[%s321] sm:$0xff] %v312
          %323 = vst [vmem:[%s321 + $0x8] sm:$0xff] %v317
          %v324 = vld [vmem:[#allocation3] sm:$0xff]
          %v325 = vld [vmem:[#allocation3 + $0x8] sm:$0xff]
          %326 = vmax.xlane.f32.xlu0 %v312
          %v327 = vpop.xlane.xlu0 %326
          %328 = vmax.xlane.f32.xlu0 %v317
          %v329 = vpop.xlane.xlu0 %328
          %v330 = vmax.f32 %v324, %v327
          %v331 = vmax.f32 %v325, %v329
          %v332 = vld [vmem:[#allocation4] sm:$0xff]
          %v333 = vld [vmem:[#allocation4 + $0x8] sm:$0xff]
          %v334 = vsub.f32 %v324, %v330
          %v335 = vsub.f32 %v325, %v331
          %v336 = vmul.f32 %v334, 1.442695
          %v337 = vpow.pop %v336
          %v338 = vmul.f32 %v335, 1.442695
          %v339 = vpow.pop %v338
          %v340 = vmul.f32 %v332, %v337
          %v341 = vmul.f32 %v333, %v339
          %343 = vset.pattern.permute.xlu0 0
          %344 = vperm.xlu0 %343, %v330
          %v345 = vpop.permute.xlu0 %344
          %348 = vset.pattern.permute.xlu0 0
          %349 = vperm.xlu0 %348, %v331
          %v350 = vpop.permute.xlu0 %349
          %v352 = vsub.f32 %v312, %v345
          %v353 = vsub.f32 %v317, %v350
          %v354 = vmul.f32 %v352, 1.442695
          %v355 = vpow.pop %v354
          %v356 = vmul.f32 %v353, 1.442695
          %v357 = vpow.pop %v356
          %358 = vadd.xlane.f32.xlu0 %v355
          %v359 = vpop.xlane.xlu0 %358
          %360 = vadd.xlane.f32.xlu0 %v357
          %v361 = vpop.xlane.xlu0 %360
          %v362 = vadd.f32 %v340, %v359
          %v363 = vadd.f32 %v341, %v361
          %vm364 = vcmask 7168
          %365 = vst.msk [vmem:[#allocation4] sm:$0xff] %vm364, %v362
          %366 = vst.msk [vmem:[#allocation4 + $0x8] sm:$0xff] %vm364, %v363
          %367 = vst.msk [vmem:[#allocation3] sm:$0xff] %vm364, %v330
          %368 = vst.msk [vmem:[#allocation3 + $0x8] sm:$0xff] %vm364, %v331
        $region44: #{tpu_custom_call.1} parent=27 // pred_fallthru
          _
        %p369 = scmp.eq.s32.totalorder %s26, 1
        // Predicated region
        $region45: #{tpu_custom_call.1} parent=27 // pred_check
          %p370 = pneg %p369
        $region46: #{tpu_custom_call.1} parent=27 // pred_check_branch
          %372 = sbr.rel (%p370) target = $region48
        $region47: #{tpu_custom_call.1} parent=27 // pred_region
          %v373 = vld [vmem:[#allocation3] sm:$0xff]
          %v374 = vld [vmem:[#allocation3 + $0x8] sm:$0xff]
          %v375 = vld [vmem:[#allocation4] sm:$0xff]
          %v376 = vld [vmem:[#allocation4 + $0x8] sm:$0xff]
          %v377 = vlog2.pop %v375
          %v378 = vmul.f32 %v377, 0.6931472
          %v379 = vlog2.pop %v376
          %v380 = vmul.f32 %v379, 0.6931472
          %v381 = vadd.f32 %v373, %v378
          %v382 = vadd.f32 %v374, %v380
          %s383 = smul.u32 %s27, 16
          %s384 = scalar_lea.vmem [#allocation2], %s383
          %v385 = vld [vmem:[%s384] sm:$0xff]
          %v386 = vld [vmem:[%s384 + $0x8] sm:$0xff]
          %388 = vset.pattern.permute.xlu0 0
          %389 = vperm.xlu0 %388, %v381
          %v390 = vpop.permute.xlu0 %389
          %393 = vset.pattern.permute.xlu0 0
          %394 = vperm.xlu0 %393, %v382
          %v395 = vpop.permute.xlu0 %394
          %v397 = vsub.f32 %v385, %v390
          %v398 = vsub.f32 %v386, %v395
          %399 = vst [vmem:[%s212] sm:$0xff] %v397
          %400 = vst [vmem:[%s212 + $0x8] sm:$0xff] %v398
        $region48: #{tpu_custom_call.1} parent=27 // pred_fallthru
          _
        %s401 = sand.u32 %s107, 1
        %s402 = scalar_lea.sflag [#allocation7], %s401
        %s403 = sand.u32 %s107, 1
        %s404 = smul.addr %s403, 16
        %s405 = scalar_lea.vmem [#allocation10], %s404
        // Predicated region
        $region49: #{tpu_custom_call.1} parent=27 // pred_check
          %p406 = pneg %p117
        $region50: #{tpu_custom_call.1} parent=27 // pred_check_branch
          %408 = sbr.rel (%p406) target = $region52
        $region51: #{tpu_custom_call.1} parent=27 // pred_region
          %s409 = smul.u32 %s27, %s26
          %s410 = smul.u32 2, %s25
          %s412 = ssub.s32 256, 256
          %413 = vsyncadd %s402, %s412
          %s414 = sadd.s32 %s409, %s410
          %s415 = smul.addr %s414, 128
          %s416 = scalar_lea.hbm %s2, %s415
          %s417 = sshll.u32 %s405, 4
          %s418 = int_to_ptr.vmem [resolvable:$true] %s417
          %423 = dma.vmem_to_hbm [thread:$0]  %s418, 256, %s416, %s402, 128, 128, 8
        $region52: #{tpu_custom_call.1} parent=27 // pred_fallthru
          _
      $region28: #{tpu_custom_call.1} parent=5 // pred_fallthru
        _
      %p424 = scmp.le.s32.totalorder 2, %s15
      // Predicated region
      $region53: #{tpu_custom_call.1} parent=5 // pred_check
        %p425 = pneg %p424
      $region54: #{tpu_custom_call.1} parent=5 // pred_check_branch
        %427 = sbr.rel (%p425) target = $region56
      $region55: #{tpu_custom_call.1} parent=5 // pred_region
        %s428 = ssub.s32 %s15, 2
        // Predicated region
        $region57: #{tpu_custom_call.1} parent=55 // pred_check
          %p429 = pneg %p123
        $region58: #{tpu_custom_call.1} parent=55 // pred_check_branch
          %431 = sbr.rel (%p429) target = $region60
        $region59: #{tpu_custom_call.1} parent=55 // pred_region
          %s432 = sand.u32 %s108, 1
          %s433 = scalar_lea.sflag [#allocation7], %s432
          %s434 = sand.u32 %s108, 1
          %s435 = smul.addr %s434, 16
          %s436 = scalar_lea.vmem [#allocation10], %s435
          %437 = dma.done %s433, 256
        $region60: #{tpu_custom_call.1} parent=55 // pred_fallthru
          _
      $region56: #{tpu_custom_call.1} parent=5 // pred_fallthru
        _
    $region6: #{tpu_custom_call.1} parent=1 // loop_footer
      %s19 = sadd.s32 1, %s15
    $region7: #{tpu_custom_call.1} parent=1 // loop_footer_branch
      %14 = sbr.rel target = $region3
    $region8: #{tpu_custom_call.1} parent=1 // loop_exit
      _
    %438 = vsyncpa [#allocation6], 1
    %s439 = scalar_lea.sflag [#allocation6], 1
    %440 = vsyncpa %s439, 1
    %441 = vsyncpa [#allocation9], 1
    %s442 = scalar_lea.sflag [#allocation9], 1
    %443 = vsyncpa %s442, 1
    %444 = vsyncpa [#allocation7], 1
    %s445 = scalar_lea.sflag [#allocation7], 1
    %446 = vsyncpa %s445, 1

</llo_original>
